<compile_context>
chip_gen: v6e
topology: v6e:2x2x1
jax: 0.10.0
libtpu: 0.0.40
codegen_flags: <defaults>
</compile_context>

<pallas_src>
import functools

import jax
import jax.numpy as jnp
from jax.experimental import pallas as pl
from jax.experimental.pallas import tpu as pltpu

LANE = 128     # lane (last-dim) granularity
SUBLANE = 8    # f32 sublane granularity


def _round_up(x, m):
    return ((x + m - 1) // m) * m


def _vmem_budget_bytes():
    # Per-TensorCore VMEM: 128 MiB (v5e/v6e), 64 MiB (v7x).  Clamp to 64 MiB
    # before the 0.75 safety factor so the scoped limit can never exceed the
    # physical per-core capacity, even if get_tpu_info() reports a per-chip
    # number on v7x.
    cap = 64 * 1024 * 1024
    try:
        cap = min(cap, int(pltpu.get_tpu_info().vmem_capacity_bytes))
    except Exception:
        pass
    return int(cap * 0.75)


@functools.lru_cache(maxsize=None)
def _buffered1_supported():
    """One-time capability probe: does this JAX/Mosaic build accept
    pipeline_mode=pl.Buffered(1) (single-buffered grid-invariant operand)?
    Cached so the probe compiles at most once; real calls never use a broad
    except and therefore never mask genuine lowering / VMEM errors."""
    def k(x_ref, w_ref, o_ref):
        o_ref[...] = jnp.dot(x_ref[...], w_ref[...],
                             preferred_element_type=jnp.float32)
    try:
        f = pl.pallas_call(
            k,
            out_shape=jax.ShapeDtypeStruct((16, LANE), jnp.float32),
            grid=(2,),
            in_specs=[pl.BlockSpec((8, LANE), lambda i: (i, 0)),
                      pl.BlockSpec((LANE, LANE), lambda i: (0, 0),
                                   pipeline_mode=pl.Buffered(1))],
            out_specs=pl.BlockSpec((8, LANE), lambda i: (i, 0)),
        )
        jax.block_until_ready(f(jnp.zeros((16, LANE), jnp.float32),
                                jnp.zeros((LANE, LANE), jnp.float32)))
        return True
    except Exception:   # probe only -- production calls do not swallow errors
        return False


# ---------------------------------------------------------------------------
# Kernels
# ---------------------------------------------------------------------------

def _linres_kernel(x_ref, w1_ref, b1_ref, w2_ref, b2_ref, o_ref):
    """One batch tile: relu(x @ W1^T + b1) -> relu(. @ W2^T + b2) -> + x."""
    x = x_ref[...]
    xf = x.astype(jnp.float32)
    # fc1 + ReLU (bf16 MXU inputs, f32 accumulation / epilogue)
    h = jnp.dot(x.astype(jnp.bfloat16), w1_ref[...],
                preferred_element_type=jnp.float32) + b1_ref[...]
    h = jnp.maximum(h, 0.0)
    # fc2 + ReLU
    h = jnp.dot(h.astype(jnp.bfloat16), w2_ref[...],
                preferred_element_type=jnp.float32) + b2_ref[...]
    h = jnp.maximum(h, 0.0)
    # residual add in f32, lane-dense store
    o_ref[...] = (h + xf).astype(o_ref.dtype)


def _fc1_kernel(x_ref, w1_ref, b1_ref, h_ref):
    """Column-tiled fc1: h[:, j] = relu(x @ W1^T[:, j] + b1[j])."""
    h = jnp.dot(x_ref[...].astype(jnp.bfloat16), w1_ref[...],
                preferred_element_type=jnp.float32) + b1_ref[...]
    h_ref[...] = jnp.maximum(h, 0.0)


def _fc2_res_kernel(h_ref, w2_ref, b2_ref, x_ref, o_ref):
    """Column-tiled fc2 + residual: out[:, j] = relu(h @ W2^T[:, j] + b2[j]) + x[:, j]."""
    h = jnp.dot(h_ref[...].astype(jnp.bfloat16), w2_ref[...],
                preferred_element_type=jnp.float32) + b2_ref[...]
    o_ref[...] = (jnp.maximum(h, 0.0)
                  + x_ref[...].astype(jnp.float32)).astype(o_ref.dtype)


# ---------------------------------------------------------------------------
# One-time parameter prep (outside the hot path)
# ---------------------------------------------------------------------------

def prepare_linres_params(w1, b1, w2, b2):
    """PyTorch-layout (out, in) weights / (out,) biases -> (in, out)-transposed,
    lane-padded bf16 weights and f32 (1, Dp) biases."""
    D = w1.shape[0]
    assert w1.shape == (D, D) and w2.shape == (D, D) \
        and b1.shape == (D,) and b2.shape == (D,), \
        "LinResBlock residual add requires input_size == output_size"
    Dp = _round_up(max(D, LANE), LANE)
    pad = Dp - D

    def prep_w(w):
        wt = jnp.asarray(w, jnp.float32).T                            # (in, out)
        return jnp.pad(wt, ((0, pad), (0, pad))).astype(jnp.bfloat16)  # zero K pad

    def prep_b(b):
        return jnp.pad(jnp.asarray(b, jnp.float32)[None, :], ((0, 0), (0, pad)))

    # TODO(synk): optional fp8 weight storage on v7x (halves resident VMEM and
    # uses the fp8 MXU path); not valid on v5e/v6e.
    return {"w1": prep_w(w1), "b1": prep_b(b1),
            "w2": prep_w(w2), "b2": prep_b(b2),
            "d": D, "dp": Dp}


# ---------------------------------------------------------------------------
# Wrapper
# ---------------------------------------------------------------------------

def _pick_batch_tile(B, tb_max, cap):
    if B < SUBLANE:
        return B                      # block == full batch dim (allowed)
    tb = min(cap, max(SUBLANE, tb_max))
    if B > 2 * SUBLANE:
        # >= 2 grid steps so the "parallel" batch axis can use both
        # TensorCores on v7x (harmless on single-TC v5e/v6e).
        tb = min(tb, _round_up((B + 1) // 2, SUBLANE))
    tb = max(SUBLANE, (tb // SUBLANE) * SUBLANE)
    return min(tb, (B // SUBLANE) * SUBLANE)


def _resident_call(B, Dp, tb, out_dtype, vmem_limit, single_buffer_weights):
    if single_buffer_weights:
        def wspec(shape):
            return pl.BlockSpec(shape, lambda i: (0, 0),
                                pipeline_mode=pl.Buffered(1))
    else:
        def wspec(shape):
            return pl.BlockSpec(shape, lambda i: (0, 0))
    # TODO(synk): sweep pl.Buffered(3) on the x/out specs on 128 MiB-VMEM parts
    # (v5e/v6e) to hide DMA jitter; keep depth 2 on v7x where VMEM is half.
    return pl.pallas_call(
        _linres_kernel,
        out_shape=jax.ShapeDtypeStruct((B, Dp), out_dtype),
        grid=(pl.cdiv(B, tb),),                       # ragged last tile masked
        in_specs=[pl.BlockSpec((tb, Dp), lambda i: (i, 0)),   # x (double-buffered)
                  wspec((Dp, Dp)), wspec((1, Dp)),            # W1^T, b1 (invariant)
                  wspec((Dp, Dp)), wspec((1, Dp))],           # W2^T, b2 (invariant)
        out_specs=pl.BlockSpec((tb, Dp), lambda i: (i, 0)),
        compiler_params=pltpu.CompilerParams(
            dimension_semantics=("parallel",),
            vmem_limit_bytes=int(vmem_limit)),
    )


def _weight_tiled_forward(xk, params, out_dtype, budget, block_n):
    """Fallback for D too large for resident weights (first relevant on v7x):
    two column-tiled pallas_calls (fc1, then fc2 + residual)."""
    B, Dp = xk.shape
    tn = block_n
    if tn is None:
        tn = next(t for t in (512, 256, 128) if Dp % t == 0)
    assert Dp % tn == 0 and tn % LANE == 0

    # Per-step VMEM: double-buffered (tb, Dp) row block + bf16 cast temp,
    # double-buffered (Dp, tn) weight block, double-buffered (tb, tn) output.
    wblk = 2 * (Dp * tn * 2 + tn * 4)
    per_row = (2 * 4 + 2) * Dp + 3 * tn * 4
    tb_max = max(SUBLANE, ((budget - wblk) // per_row) // SUBLANE * SUBLANE)
    tb = _pick_batch_tile(B, tb_max, 512)

    grid = (pl.cdiv(B, tb), Dp // tn)
    cparams = pltpu.CompilerParams(
        dimension_semantics=("parallel", "parallel"),
        vmem_limit_bytes=int(budget))

    # TODO(synk): stream the intermediate h as bf16 and K-tile the weight
    # column blocks for extremely large D; f32 h keeps layout rules trivial.
    h = pl.pallas_call(
        _fc1_kernel,
        out_shape=jax.ShapeDtypeStruct((B, Dp), jnp.float32),
        grid=grid,
        in_specs=[pl.BlockSpec((tb, Dp), lambda i, j: (i, 0)),   # x row block
                  pl.BlockSpec((Dp, tn), lambda i, j: (0, j)),   # W1^T cols
                  pl.BlockSpec((1, tn), lambda i, j: (0, j))],   # b1 cols
        out_specs=pl.BlockSpec((tb, tn), lambda i, j: (i, j)),
        compiler_params=cparams,
    )(xk, params["w1"], params["b1"])

    out = pl.pallas_call(
        _fc2_res_kernel,
        out_shape=jax.ShapeDtypeStruct((B, Dp), out_dtype),
        grid=grid,
        in_specs=[pl.BlockSpec((tb, Dp), lambda i, j: (i, 0)),   # h row block
                  pl.BlockSpec((Dp, tn), lambda i, j: (0, j)),   # W2^T cols
                  pl.BlockSpec((1, tn), lambda i, j: (0, j)),    # b2 cols
                  pl.BlockSpec((tb, tn), lambda i, j: (i, j))],  # x (residual)
        out_specs=pl.BlockSpec((tb, tn), lambda i, j: (i, j)),
        compiler_params=cparams,
    )(h, params["w2"], params["b2"], xk)
    return out


def lin_res_block(x, params, *, block_batch=None, stream_bf16=False,
                  force_weight_tiling=False, block_n=None):
    """x: (B, D); params: output of prepare_linres_params()."""
    B, D = x.shape
    Dp = params["dp"]
    assert D == params["d"], "feature size mismatch with prepared params"

    budget = _vmem_budget_bytes()
    single_buf_w = _buffered1_supported()
    n_w_buf = 1 if single_buf_w else 2
    weight_bytes = n_w_buf * (2 * Dp * Dp * 2 + 2 * Dp * 4)
    use_resident = (not force_weight_tiling) and weight_bytes <= budget // 2

    # Present x to the kernel.  Optional bf16 streaming halves x/out HBM bytes
    # (the dots consume bf16 anyway; bias/ReLU/residual stay f32 in-kernel).
    in_dtype = jnp.bfloat16 if stream_bf16 else jnp.float32
    out_dtype = in_dtype
    xk = x if x.dtype == in_dtype else x.astype(in_dtype)
    if Dp != D:
        # Lane padding only when D is not 128-aligned; zero padding is required
        # so padded K columns multiply zero-padded weight rows.
        xk = jnp.pad(xk, ((0, 0), (0, Dp - D)))
    # NOTE: no batch padding -- grids use cdiv(B, tb); the ragged last batch
    # tile is masked on store and rows are independent, so no extra HBM pass.

    if use_resident:
        bpe = 2 if stream_bf16 else 4
        # Double-buffered x and out tiles + in-kernel temporaries
        # (x_bf16, h f32, h_bf16, epilogue) counted per review.
        per_row = (2 + 2) * Dp * bpe + 5 * Dp * 4
        tb_max = max(SUBLANE,
                     ((budget - weight_bytes) // per_row) // SUBLANE * SUBLANE)
        cap = 1024 if block_batch is None else block_batch
        tb = _pick_batch_tile(B, tb_max, cap)
        out = _resident_call(B, Dp, tb, out_dtype, budget, single_buf_w)(
            xk, params["w1"], params["b1"], params["w2"], params["b2"])
    else:
        out = _weight_tiled_forward(xk, params, out_dtype, budget, block_n)

    if Dp != D:
        out = out[:, :D]
    return out


# ---------------------------------------------------------------------------
# Reference + self-test
# ---------------------------------------------------------------------------

def lin_res_block_ref(x, w1, b1, w2, b2):
    h = jnp.maximum(x @ w1.T + b1, 0.0)
    h = jnp.maximum(h @ w2.T + b2, 0.0)
    return h + x


def _rand_params(key, D):
    kw1, kb1, kw2, kb2 = jax.random.split(key, 4)
    bound = 1.0 / (D ** 0.5)
    w1 = jax.random.uniform(kw1, (D, D), jnp.float32, -bound, bound)  # (out, in)
    b1 = jax.random.uniform(kb1, (D,), jnp.float32, -bound, bound)
    w2 = jax.random.uniform(kw2, (D, D), jnp.float32, -bound, bound)
    b2 = jax.random.uniform(kb2, (D,), jnp.float32, -bound, bound)
    return w1, b1, w2, b2


if __name__ == "__main__":
    key = jax.random.PRNGKey(0)
    k1, k2, k3, k4 = jax.random.split(key, 4)

    # 1) Main (weight-resident) path at small shapes consistent with the module.
    B, D = 8, 32
    x = jax.random.normal(k1, (B, D), dtype=jnp.float32)
    w1, b1, w2, b2 = _rand_params(k2, D)
    params = prepare_linres_params(w1, b1, w2, b2)   # one-time prep, off hot path
    out = jax.block_until_ready(lin_res_block(x, params))
    ref = lin_res_block_ref(x, w1, b1, w2, b2)
    assert out.shape == (B, D)
    # bf16 MXU inputs with f32 accumulation -> slightly looser tolerance.
    assert jnp.allclose(out, ref, atol=3e-2, rtol=3e-2), "resident path mismatch"

    # 2) Weight-tiled fallback path (forced) -- the large-D / v7x path.
    B2, D2 = 16, 256
    x2 = jax.random.normal(k3, (B2, D2), dtype=jnp.float32)
    p2 = _rand_params(k4, D2)
    params2 = prepare_linres_params(*p2)
    out2 = jax.block_until_ready(
        lin_res_block(x2, params2, force_weight_tiling=True, block_n=128))
    ref2 = lin_res_block_ref(x2, *p2)
    assert out2.shape == (B2, D2)
    assert jnp.allclose(out2, ref2, atol=5e-2, rtol=5e-2), "tiled path mismatch"

    print("KERNEL_OK")
</pallas_src>

<mosaic_0001>
module attributes {stable_mosaic.version = 11 : i64} {
  func.func @k(%arg0: i32, %arg1: memref<8x128xf32, #tpu.memory_space<vmem>>, %arg2: memref<128x128xf32, #tpu.memory_space<vmem>>, %arg3: memref<8x128xf32, #tpu.memory_space<vmem>>) attributes {dimension_semantics = [#tpu.dimension_semantics<arbitrary>], iteration_bounds = array<i64: 2>, scalar_prefetch = 0 : i64, scratch_operands = 0 : i64, tpu.core_type = #tpu.core_type<tc>, window_params = [{transform_indices = @transform_0, window_bounds = array<i64: 8, 128>}, {pipeline_mode = #tpu.pipeline_mode<synchronous>, transform_indices = @transform_1, window_bounds = array<i64: 128, 128>}, {transform_indices = @transform_2, window_bounds = array<i64: 8, 128>}]} {
    %c0 = arith.constant 0 : index
    %c0_0 = arith.constant 0 : index
    %0 = vector.load %arg1[%c0, %c0_0] : memref<8x128xf32, #tpu.memory_space<vmem>>, vector<8x128xf32>
    %c0_1 = arith.constant 0 : index
    %c0_2 = arith.constant 0 : index
    %1 = vector.load %arg2[%c0_1, %c0_2] : memref<128x128xf32, #tpu.memory_space<vmem>>, vector<128x128xf32>
    %cst = arith.constant dense<0.000000e+00> : vector<8x128xf32>
    %2 = tpu.matmul %0, %1, %cst {dimension_numbers = #tpu.dot_dimension_numbers<[1], [0], [0], [1], [0, 0, 1, 1], [], []>} : vector<8x128xf32>, vector<128x128xf32>, vector<8x128xf32> -> vector<8x128xf32>
    %c0_3 = arith.constant 0 : index
    %c0_4 = arith.constant 0 : index
    %3 = vector.load %arg3[%c0_3, %c0_4] : memref<8x128xf32, #tpu.memory_space<vmem>>, vector<8x128xf32>
    tpu.vector_store %arg3[%c0_3, %c0_4], %2 {strides = array<i32>} : memref<8x128xf32, #tpu.memory_space<vmem>>, vector<8x128xf32>,
    return
  }
  func.func @transform_0(%arg0: i32) -> (i32, i32) {
    %c0_i32 = arith.constant 0 : i32
    %c0_i32_0 = arith.constant 0 : i32
    return %arg0, %c0_i32 : i32, i32
  }
  func.func @transform_1(%arg0: i32) -> (i32, i32) {
    %c0_i32 = arith.constant 0 : i32
    %c0_i32_0 = arith.constant 0 : i32
    %c0_i32_1 = arith.constant 0 : i32
    return %c0_i32, %c0_i32_0 : i32, i32
  }
  func.func @transform_2(%arg0: i32) -> (i32, i32) {
    %c0_i32 = arith.constant 0 : i32
    %c0_i32_0 = arith.constant 0 : i32
    return %arg0, %c0_i32 : i32, i32
  }
}

module attributes {stable_mosaic.version = 11 : i64} {
  func.func @_linres_kernel(%arg0: i32, %arg1: memref<8x128xf32, #tpu.memory_space<vmem>>, %arg2: memref<128x128xbf16, #tpu.memory_space<vmem>>, %arg3: memref<1x128xf32, #tpu.memory_space<vmem>>, %arg4: memref<128x128xbf16, #tpu.memory_space<vmem>>, %arg5: memref<1x128xf32, #tpu.memory_space<vmem>>, %arg6: memref<8x128xf32, #tpu.memory_space<vmem>>) attributes {dimension_semantics = [#tpu.dimension_semantics<parallel>], iteration_bounds = array<i64: 1>, scalar_prefetch = 0 : i64, scratch_operands = 0 : i64, tpu.core_type = #tpu.core_type<tc>, window_params = [{transform_indices = @transform_0, window_bounds = array<i64: 8, 128>}, {pipeline_mode = #tpu.pipeline_mode<synchronous>, transform_indices = @transform_1, window_bounds = array<i64: 128, 128>}, {pipeline_mode = #tpu.pipeline_mode<synchronous>, transform_indices = @transform_2, window_bounds = array<i64: 1, 128>}, {pipeline_mode = #tpu.pipeline_mode<synchronous>, transform_indices = @transform_3, window_bounds = array<i64: 128, 128>}, {pipeline_mode = #tpu.pipeline_mode<synchronous>, transform_indices = @transform_4, window_bounds = array<i64: 1, 128>}, {transform_indices = @transform_5, window_bounds = array<i64: 8, 128>}]} {
    %c0 = arith.constant 0 : index
    %c0_0 = arith.constant 0 : index
    %0 = vector.load %arg1[%c0, %c0_0] : memref<8x128xf32, #tpu.memory_space<vmem>>, vector<8x128xf32>
    %1 = arith.truncf %0 : vector<8x128xf32> to vector<8x128xbf16>
    %c0_1 = arith.constant 0 : index
    %c0_2 = arith.constant 0 : index
    %2 = vector.load %arg2[%c0_1, %c0_2] : memref<128x128xbf16, #tpu.memory_space<vmem>>, vector<128x128xbf16>
    %cst = arith.constant dense<0.000000e+00> : vector<8x128xf32>
    %3 = tpu.matmul %1, %2, %cst {dimension_numbers = #tpu.dot_dimension_numbers<[1], [0], [0], [1], [0, 0, 1, 1], [], []>} : vector<8x128xbf16>, vector<128x128xbf16>, vector<8x128xf32> -> vector<8x128xf32>
    %c0_3 = arith.constant 0 : index
    %c0_4 = arith.constant 0 : index
    %4 = vector.load %arg3[%c0_3, %c0_4] : memref<1x128xf32, #tpu.memory_space<vmem>>, vector<1x128xf32>
    %5 = vector.broadcast %4 : vector<1x128xf32> to vector<8x128xf32>
    %6 = arith.addf %3, %5 : vector<8x128xf32>
    %cst_5 = arith.constant 0.000000e+00 : f32
    %7 = vector.broadcast %cst_5 : f32 to vector<8x128xf32>
    %8 = arith.maximumf %6, %7 : vector<8x128xf32>
    %9 = arith.truncf %8 : vector<8x128xf32> to vector<8x128xbf16>
    %c0_6 = arith.constant 0 : index
    %c0_7 = arith.constant 0 : index
    %10 = vector.load %arg4[%c0_6, %c0_7] : memref<128x128xbf16, #tpu.memory_space<vmem>>, vector<128x128xbf16>
    %cst_8 = arith.constant dense<0.000000e+00> : vector<8x128xf32>
    %11 = tpu.matmul %9, %10, %cst_8 {dimension_numbers = #tpu.dot_dimension_numbers<[1], [0], [0], [1], [0, 0, 1, 1], [], []>} : vector<8x128xbf16>, vector<128x128xbf16>, vector<8x128xf32> -> vector<8x128xf32>
    %c0_9 = arith.constant 0 : index
    %c0_10 = arith.constant 0 : index
    %12 = vector.load %arg5[%c0_9, %c0_10] : memref<1x128xf32, #tpu.memory_space<vmem>>, vector<1x128xf32>
    %13 = vector.broadcast %12 : vector<1x128xf32> to vector<8x128xf32>
    %14 = arith.addf %11, %13 : vector<8x128xf32>
    %cst_11 = arith.constant 0.000000e+00 : f32
    %15 = vector.broadcast %cst_11 : f32 to vector<8x128xf32>
    %16 = arith.maximumf %14, %15 : vector<8x128xf32>
    %17 = arith.addf %16, %0 : vector<8x128xf32>
    %c0_12 = arith.constant 0 : index
    %c0_13 = arith.constant 0 : index
    %18 = vector.load %arg6[%c0_12, %c0_13] : memref<8x128xf32, #tpu.memory_space<vmem>>, vector<8x128xf32>
    tpu.vector_store %arg6[%c0_12, %c0_13], %17 {strides = array<i32>} : memref<8x128xf32, #tpu.memory_space<vmem>>, vector<8x128xf32>,
    return
  }
  func.func @transform_0(%arg0: i32) -> (i32, i32) {
    %c0_i32 = arith.constant 0 : i32
    %c0_i32_0 = arith.constant 0 : i32
    return %arg0, %c0_i32 : i32, i32
  }
  func.func @transform_1(%arg0: i32) -> (i32, i32) {
    %c0_i32 = arith.constant 0 : i32
    %c0_i32_0 = arith.constant 0 : i32
    %c0_i32_1 = arith.constant 0 : i32
    return %c0_i32, %c0_i32_0 : i32, i32
  }
  func.func @transform_2(%arg0: i32) -> (i32, i32) {
    %c0_i32 = arith.constant 0 : i32
    %c0_i32_0 = arith.constant 0 : i32
    %c0_i32_1 = arith.constant 0 : i32
    return %c0_i32, %c0_i32_0 : i32, i32
  }
  func.func @transform_3(%arg0: i32) -> (i32, i32) {
    %c0_i32 = arith.constant 0 : i32
    %c0_i32_0 = arith.constant 0 : i32
    %c0_i32_1 = arith.constant 0 : i32
    return %c0_i32, %c0_i32_0 : i32, i32
  }
  func.func @transform_4(%arg0: i32) -> (i32, i32) {
    %c0_i32 = arith.constant 0 : i32
    %c0_i32_0 = arith.constant 0 : i32
    %c0_i32_1 = arith.constant 0 : i32
    return %c0_i32, %c0_i32_0 : i32, i32
  }
  func.func @transform_5(%arg0: i32) -> (i32, i32) {
    %c0_i32 = arith.constant 0 : i32
    %c0_i32_0 = arith.constant 0 : i32
    return %arg0, %c0_i32 : i32, i32
  }
}

</mosaic_0001>

<llo_original>
// kernel: tpu_custom_call.1
$region0: #{tpu_custom_call.1}
  #allocation0 [shape = 'u32[]', space=smem, size = 0x4, offset = 0x4, fixed_abs, tag = 'smem constant byte address 0x4 - core index']
  #allocation1 [shape = 'u32[144,128]{1,0:T(1,128)}', space=vmem, size = 0x12000, scoped, tag = 'internal scratch']
  %s0 = inlined_call_operand.hbm [shape: f32[16,128], index: 0, kind: input, shape index: {}]
  %s1 = inlined_call_operand.hbm [shape: f32[128,128], index: 1, kind: input, shape index: {}]
  %s2 = inlined_call_operand.hbm [shape: f32[16,128], index: 2, kind: output, shape index: {}]
  %s3 = sld [smem:[#allocation0]]
  $region49: #{tpu_custom_call.1} parent=0
    _
  %s5 = ssub.s32 1, %s3
  %s6 = scalar_select 0, %s5, %s3
  $region1: #{tpu_custom_call.1} parent=0
    #allocation2 [shape = 'u8[8192]{0}', space=vmem, size = 0x2000, scoped, tag = 'input window, operand 0']
    #allocation3 [shape = 's32[2]{0}', space=sflag, size = 0x8, scoped, tag = 'scoped memory for tpu_custom_call.1']
    #allocation4 [shape = 's32[2]{0}', space=sflag, size = 0x8, scoped, tag = 'scoped memory for tpu_custom_call.1']
    #allocation5 [shape = 'u8[65536]{0}', space=vmem, size = 0x10000, scoped, tag = 'input window, operand 1, single buffered']
    #allocation6 [shape = 's32[1]{0}', space=sflag, size = 0x4, scoped, tag = 'scoped memory for tpu_custom_call.1']
    #allocation7 [shape = 'u8[8192]{0}', space=vmem, size = 0x2000, scoped, tag = 'output window, operand 0']
    %7 = vsyncpa [#allocation3], 0
    %s8 = scalar_lea.sflag [#allocation3], 1
    %9 = vsyncpa %s8, 0
    %10 = vsyncpa [#allocation6], 0
    %11 = vsyncpa [#allocation4], 0
    %s12 = scalar_lea.sflag [#allocation4], 1
    %13 = vsyncpa %s12, 0
    loop: start=0, step=1, limit=4
    $region2: #{tpu_custom_call.1} parent=1 // loop_pre_header
      _
    $region3: #{tpu_custom_call.1} parent=1 // loop_header
      %s15 = sphi 0, %s19
      %p16 = scmp.ge.s32.totalorder %s15, 4
      %s25 = sphi 0, %s27
      %s28 = sphi 0, %s25
      %s29 = sphi 0, %s28
      %s45 = sphi 0, %s29
      %s49 = sphi 0, %s49
      %s51 = sphi 0, %s49
      %s52 = sphi 0, %s51
      %s66 = sphi 0, %s52
      %s72 = sphi 0, %s74
      %s75 = sphi 0, %s72
      %s76 = sphi 0, %s75
      %s92 = sphi 0, %s76
    $region4: #{tpu_custom_call.1} parent=1 // loop_header_branch
      %18 = sbr.rel (%p16) target = $region8
    $region5: #{tpu_custom_call.1} parent=1 // loop_body
      %s20 = ssub.s32 %s15, 1
      %s21 = ssub.s32 %s15, 2
      %s22 = sadd.s32 %s15, 1
      %s23 = ssub.s32 %s15, %s22
      %p24 = scmp.eq.s32.totalorder %s23, 0
      %s26 = sadd.s32 %s25, 1
      %s27 = scalar_select %p24, %s25, %s26
      %p30 = pneg %p24
      %p31 = scmp.eq.s32.totalorder %s15, 1
      %p32 = por %p30, %p31
      %p33 = scmp.ne.s32.totalorder %s25, %s28
      %p34 = scmp.eq.s32.totalorder %s15, 0
      %p35 = por %p33, %p34
      %p36 = scmp.ne.s32.totalorder %s25, %s28
      %p37 = scmp.eq.s32.totalorder %s20, 1
      %p38 = por %p36, %p37
      %p39 = scmp.ne.s32.totalorder %s28, %s29
      %p40 = scmp.eq.s32.totalorder %s20, 0
      %p41 = por %p39, %p40
      %p42 = scmp.ne.s32.totalorder %s28, %s29
      %p43 = scmp.eq.s32.totalorder %s21, 1
      %p44 = por %p42, %p43
      %p46 = scmp.ne.s32.totalorder %s29, %s45
      %p47 = scmp.eq.s32.totalorder %s21, 0
      %p48 = por %p46, %p47
      %s50 = sadd.s32 %s49, 1
      %p53 = scmp.eq.s32.totalorder %s15, 1
      %p54 = scmp.ne.s32.totalorder %s49, %s51
      %p55 = scmp.eq.s32.totalorder %s15, 0
      %p56 = por %p54, %p55
      %p57 = scmp.ne.s32.totalorder %s49, %s51
      %p58 = scmp.eq.s32.totalorder %s20, 1
      %p59 = por %p57, %p58
      %p60 = scmp.ne.s32.totalorder %s51, %s52
      %p61 = scmp.eq.s32.totalorder %s20, 0
      %p62 = por %p60, %p61
      %p63 = scmp.ne.s32.totalorder %s51, %s52
      %p64 = scmp.eq.s32.totalorder %s21, 1
      %p65 = por %p63, %p64
      %p67 = scmp.ne.s32.totalorder %s52, %s66
      %p68 = scmp.eq.s32.totalorder %s21, 0
      %p69 = por %p67, %p68
      %s70 = ssub.s32 %s15, %s22
      %p71 = scmp.eq.s32.totalorder %s70, 0
      %s73 = sadd.s32 %s72, 1
      %s74 = scalar_select %p71, %s72, %s73
      %p77 = pneg %p71
      %p78 = scmp.eq.s32.totalorder %s15, 1
      %p79 = por %p77, %p78
      %p80 = scmp.ne.s32.totalorder %s72, %s75
      %p81 = scmp.eq.s32.totalorder %s15, 0
      %p82 = por %p80, %p81
      %p83 = scmp.ne.s32.totalorder %s72, %s75
      %p84 = scmp.eq.s32.totalorder %s20, 1
      %p85 = por %p83, %p84
      %p86 = scmp.ne.s32.totalorder %s75, %s76
      %p87 = scmp.eq.s32.totalorder %s20, 0
      %p88 = por %p86, %p87
      %p89 = scmp.ne.s32.totalorder %s75, %s76
      %p90 = scmp.eq.s32.totalorder %s21, 1
      %p91 = por %p89, %p90
      %p93 = scmp.ne.s32.totalorder %s76, %s92
      %p94 = scmp.eq.s32.totalorder %s21, 0
      %p95 = por %p93, %p94
      %p96 = scmp.le.s32.totalorder 1, %s15
      %p97 = scmp.lt.s32.totalorder %s15, 3
      %p98 = pnand %p96, %p97
      %p99 = pneg %p98
      // Predicated region
      $region9: #{tpu_custom_call.1} parent=5 // pred_check
        _
      $region10: #{tpu_custom_call.1} parent=5 // pred_check_branch
        %101 = sbr.rel (%p98) target = $region12
      $region11: #{tpu_custom_call.1} parent=5 // pred_region
        %s102 = ssub.s32 %s15, 1
        // Predicated region
        $region13: #{tpu_custom_call.1} parent=11 // pred_check
          %p103 = pneg %p62
        $region14: #{tpu_custom_call.1} parent=11 // pred_check_branch
          %105 = sbr.rel (%p103) target = $region16
        $region15: #{tpu_custom_call.1} parent=11 // pred_region
          %s107 = ssub.s32 2048, 2048
          %108 = vsyncadd [#allocation6], %s107
          %s109 = sshll.u32 [#allocation5], 4
          %s110 = int_to_ptr.vmem [resolvable:$true] %s109
          %115 = dma.hbm_to_vmem [thread:$0]  %s1, 2048, %s110, [#allocation6], 128, 128, 8
        $region16: #{tpu_custom_call.1} parent=11 // pred_fallthru
          _
      $region12: #{tpu_custom_call.1} parent=5 // pred_fallthru
        _
      %p116 = scmp.lt.s32.totalorder %s15, 2
      // Predicated region
      $region17: #{tpu_custom_call.1} parent=5 // pred_check
        %p117 = pneg %p116
      $region18: #{tpu_custom_call.1} parent=5 // pred_check_branch
        %119 = sbr.rel (%p117) target = $region20
      $region19: #{tpu_custom_call.1} parent=5 // pred_region
        // Predicated region
        $region21: #{tpu_custom_call.1} parent=19 // pred_check
          %p120 = pneg %p35
        $region22: #{tpu_custom_call.1} parent=19 // pred_check_branch
          %122 = sbr.rel (%p120) target = $region24
        $region23: #{tpu_custom_call.1} parent=19 // pred_region
          %s123 = sand.u32 %s25, 1
          %s124 = scalar_lea.sflag [#allocation3], %s123
          %s125 = sand.u32 %s25, 1
          %s126 = smul.addr %s125, 8
          %s127 = scalar_lea.vmem [#allocation2], %s126
          %s129 = ssub.s32 128, 128
          %130 = vsyncadd %s124, %s129
          %s131 = smul.addr %s15, 128
          %s132 = scalar_lea.hbm %s0, %s131
          %s134 = sshll.u32 %s127, 4
          %s135 = int_to_ptr.vmem [resolvable:$true] %s134
          %137 = dma.hbm_to_vmem [thread:$0]  %s132, 128, %s135, %s124
        $region24: #{tpu_custom_call.1} parent=19 // pred_fallthru
          _
      $region20: #{tpu_custom_call.1} parent=5 // pred_fallthru
        _
      %p138 = scmp.le.s32.totalorder 1, %s15
      %p139 = scmp.lt.s32.totalorder %s15, 3
      %p140 = pnand %p138, %p139
      %p141 = pneg %p140
      // Predicated region
      $region25: #{tpu_custom_call.1} parent=5 // pred_check
        _
      $region26: #{tpu_custom_call.1} parent=5 // pred_check_branch
        %143 = sbr.rel (%p140) target = $region28
      $region27: #{tpu_custom_call.1} parent=5 // pred_region
        %s144 = ssub.s32 %s15, 1
        %s145 = sand.u32 %s28, 1
        %s146 = scalar_lea.sflag [#allocation3], %s145
        %s147 = sand.u32 %s28, 1
        %s148 = smul.addr %s147, 8
        %s149 = scalar_lea.vmem [#allocation2], %s148
        // Predicated region
        $region29: #{tpu_custom_call.1} parent=27 // pred_check
          %p150 = pneg %p41
        $region30: #{tpu_custom_call.1} parent=27 // pred_check_branch
          %152 = sbr.rel (%p150) target = $region32
        $region31: #{tpu_custom_call.1} parent=27 // pred_region
          %153 = dma.done %s146, 128
        $region32: #{tpu_custom_call.1} parent=27 // pred_fallthru
          _
        // Predicated region
        $region33: #{tpu_custom_call.1} parent=27 // pred_check
          %p154 = pneg %p62
        $region34: #{tpu_custom_call.1} parent=27 // pred_check_branch
          %156 = sbr.rel (%p154) target = $region36
        $region35: #{tpu_custom_call.1} parent=27 // pred_region
          %157 = dma.done [#allocation6], 2048
        $region36: #{tpu_custom_call.1} parent=27 // pred_fallthru
          _
        %s158 = sand.u32 %s28, 1
        %s159 = scalar_lea.sflag [#allocation3], %s158
        %s160 = sand.u32 %s28, 1
        %s161 = smul.addr %s160, 8
        %s162 = scalar_lea.vmem [#allocation2], %s161
        %p163 = pneg %p41
        %p164 = pneg %p38
        %p165 = pneg %p62
        %p166 = pneg %p59
        %p167 = pneg %p88
        %p168 = pneg %p85
        %s169 = sand.u32 %s75, 1
        %s170 = scalar_lea.sflag [#allocation4], %s169
        %s171 = sand.u32 %s75, 1
        %s172 = smul.addr %s171, 8
        %s173 = scalar_lea.vmem [#allocation7], %s172
        %v174 = vld [vmem:[%s149] sm:$0xff]
        %v175 = vld [vmem:[#allocation5] sm:$0xff]
        %v176 = vld [vmem:[#allocation5 + $0x8] sm:$0xff]
        %v177 = vld [vmem:[#allocation5 + $0x10] sm:$0xff]
        %v178 = vld [vmem:[#allocation5 + $0x18] sm:$0xff]
        %v179 = vld [vmem:[#allocation5 + $0x20] sm:$0xff]
        %v180 = vld [vmem:[#allocation5 + $0x28] sm:$0xff]
        %v181 = vld [vmem:[#allocation5 + $0x30] sm:$0xff]
        %v182 = vld [vmem:[#allocation5 + $0x38] sm:$0xff]
        %v183 = vld [vmem:[#allocation5 + $0x40] sm:$0xff]
        %v184 = vld [vmem:[#allocation5 + $0x48] sm:$0xff]
        %v185 = vld [vmem:[#allocation5 + $0x50] sm:$0xff]
        %v186 = vld [vmem:[#allocation5 + $0x58] sm:$0xff]
        %v187 = vld [vmem:[#allocation5 + $0x60] sm:$0xff]
        %v188 = vld [vmem:[#allocation5 + $0x68] sm:$0xff]
        %v189 = vld [vmem:[#allocation5 + $0x70] sm:$0xff]
        %v190 = vld [vmem:[#allocation5 + $0x78] sm:$0xff]
        %191 = vmatprep.subr.mxu0 0.0
        %192 = vmatpush1.msra.mxu0 %v190
        %193 = vmatprep.subr.mxu0 0.0
        %194 = vmatpush1.msra.mxu0 %v189
        %195 = vmatprep.subr.mxu0 0.0
        %196 = vmatpush1.msra.mxu0 %v188
        %197 = vmatprep.subr.mxu0 0.0
        %198 = vmatpush1.msra.mxu0 %v187
        %199 = vmatprep.subr.mxu0 0.0
        %200 = vmatpush1.msra.mxu0 %v186
        %201 = vmatprep.subr.mxu0 0.0
        %202 = vmatpush1.msra.mxu0 %v185
        %203 = vmatprep.subr.mxu0 0.0
        %204 = vmatpush1.msra.mxu0 %v184
        %205 = vmatprep.subr.mxu0 0.0
        %206 = vmatpush1.msra.mxu0 %v183
        %207 = vmatprep.subr.mxu0 0.0
        %208 = vmatpush1.msra.mxu0 %v182
        %209 = vmatprep.subr.mxu0 0.0
        %210 = vmatpush1.msra.mxu0 %v181
        %211 = vmatprep.subr.mxu0 0.0
        %212 = vmatpush1.msra.mxu0 %v180
        %213 = vmatprep.subr.mxu0 0.0
        %214 = vmatpush1.msra.mxu0 %v179
        %215 = vmatprep.subr.mxu0 0.0
        %216 = vmatpush1.msra.mxu0 %v178
        %217 = vmatprep.subr.mxu0 0.0
        %218 = vmatpush1.msra.mxu0 %v177
        %219 = vmatprep.subr.mxu0 0.0
        %220 = vmatpush1.msra.mxu0 %v176
        %221 = vmatprep.subr.mxu0 0.0
        %222 = vmatpush1.msra.mxu0 %v175
        %223 = vmatprep.subr.mxu0 0.0
        %224 = vmatpush2.msra.mxu0 0.0
        %225 = vmatprep.subr.mxu0 0.0
        %226 = vmatpush2.msra.mxu0 0.0
        %227 = vmatprep.subr.mxu0 0.0
        %228 = vmatpush2.msra.mxu0 0.0
        %229 = vmatprep.subr.mxu0 0.0
        %230 = vmatpush2.msra.mxu0 0.0
        %231 = vmatprep.subr.mxu0 0.0
        %232 = vmatpush2.msra.mxu0 0.0
        %233 = vmatprep.subr.mxu0 0.0
        %234 = vmatpush2.msra.mxu0 0.0
        %235 = vmatprep.subr.mxu0 0.0
        %236 = vmatpush2.msra.mxu0 0.0
        %237 = vmatprep.subr.mxu0 0.0
        %238 = vmatpush2.msra.mxu0 0.0
        %239 = vmatprep.subr.mxu0 0.0
        %240 = vmatpush2.msra.mxu0 0.0
        %241 = vmatprep.subr.mxu0 0.0
        %242 = vmatpush2.msra.mxu0 0.0
        %243 = vmatprep.subr.mxu0 0.0
        %244 = vmatpush2.msra.mxu0 0.0
        %245 = vmatprep.subr.mxu0 0.0
        %246 = vmatpush2.msra.mxu0 0.0
        %247 = vmatprep.subr.mxu0 0.0
        %248 = vmatpush2.msra.mxu0 0.0
        %249 = vmatprep.subr.mxu0 0.0
        %250 = vmatpush2.msra.mxu0 0.0
        %251 = vmatprep.subr.mxu0 0.0
        %252 = vmatpush2.msra.mxu0 0.0
        %253 = vmatprep.subr.mxu0 0.0
        %254 = vmatpush2.msra.mxu0 0.0
        %255 = vmatprep.mubr.f32.mxu0 0.0
        %256 = vmatmul.mubr.f32.gmra.mxu0 %v174
        %v257 = vpop.f32.mrf.mxu0
        %v258 = vadd.f32 0.0, %v257
        %v259 = vpop.f32.mrf.mxu0
        %260 = vdwg.mxu0
        %261 = vst [vmem:[%s173] sm:$0xff] %v258
        %s262 = sand.u32 %s75, 1
        %s263 = scalar_lea.sflag [#allocation4], %s262
        %s264 = sand.u32 %s75, 1
        %s265 = smul.addr %s264, 8
        %s266 = scalar_lea.vmem [#allocation7], %s265
        // Predicated region
        $region37: #{tpu_custom_call.1} parent=27 // pred_check
          %p267 = pneg %p85
        $region38: #{tpu_custom_call.1} parent=27 // pred_check_branch
          %269 = sbr.rel (%p267) target = $region40
        $region39: #{tpu_custom_call.1} parent=27 // pred_region
          %s271 = ssub.s32 128, 128
          %272 = vsyncadd %s263, %s271
          %s273 = smul.addr %s20, 128
          %s274 = scalar_lea.hbm %s2, %s273
          %s276 = sshll.u32 %s266, 4
          %s277 = int_to_ptr.vmem [resolvable:$true] %s276
          %279 = dma.vmem_to_hbm [thread:$0]  %s277, 128, %s274, %s263
        $region40: #{tpu_custom_call.1} parent=27 // pred_fallthru
          _
      $region28: #{tpu_custom_call.1} parent=5 // pred_fallthru
        _
      %p280 = scmp.le.s32.totalorder 2, %s15
      // Predicated region
      $region41: #{tpu_custom_call.1} parent=5 // pred_check
        %p281 = pneg %p280
      $region42: #{tpu_custom_call.1} parent=5 // pred_check_branch
        %283 = sbr.rel (%p281) target = $region44
      $region43: #{tpu_custom_call.1} parent=5 // pred_region
        %s284 = ssub.s32 %s15, 2
        // Predicated region
        $region45: #{tpu_custom_call.1} parent=43 // pred_check
          %p285 = pneg %p91
        $region46: #{tpu_custom_call.1} parent=43 // pred_check_branch
          %287 = sbr.rel (%p285) target = $region48
        $region47: #{tpu_custom_call.1} parent=43 // pred_region
          %s288 = sand.u32 %s76, 1
          %s289 = scalar_lea.sflag [#allocation4], %s288
          %s290 = sand.u32 %s76, 1
          %s291 = smul.addr %s290, 8
          %s292 = scalar_lea.vmem [#allocation7], %s291
          %293 = dma.done %s289, 128
        $region48: #{tpu_custom_call.1} parent=43 // pred_fallthru
          _
      $region44: #{tpu_custom_call.1} parent=5 // pred_fallthru
        _
    $region6: #{tpu_custom_call.1} parent=1 // loop_footer
      %s19 = sadd.s32 1, %s15
    $region7: #{tpu_custom_call.1} parent=1 // loop_footer_branch
      %14 = sbr.rel target = $region3
    $region8: #{tpu_custom_call.1} parent=1 // loop_exit
      _
    %294 = vsyncpa [#allocation3], 1
    %s295 = scalar_lea.sflag [#allocation3], 1
    %296 = vsyncpa %s295, 1
    %297 = vsyncpa [#allocation6], 1
    %298 = vsyncpa [#allocation4], 1
    %s299 = scalar_lea.sflag [#allocation4], 1
    %300 = vsyncpa %s299, 1

// kernel: tpu_custom_call.1
$region0: #{tpu_custom_call.1}
  #allocation0 [shape = 'u32[]', space=smem, size = 0x4, offset = 0x4, fixed_abs, tag = 'smem constant byte address 0x4 - core index']
  #allocation1 [shape = 'u32[144,128]{1,0:T(1,128)}', space=vmem, size = 0x12000, scoped, tag = 'internal scratch']
  %s0 = inlined_call_operand.hbm [shape: f32[8,128], index: 0, kind: input, shape index: {}]
  %s1 = inlined_call_operand.hbm [shape: bf16[128,128], index: 1, kind: input, shape index: {}]
  %s2 = inlined_call_operand.vmem [shape: f32[1,128], index: 2, kind: input, shape index: {}]
  %s3 = inlined_call_operand.hbm [shape: bf16[128,128], index: 3, kind: input, shape index: {}]
  %s4 = inlined_call_operand.vmem [shape: f32[1,128], index: 4, kind: input, shape index: {}]
  %s5 = inlined_call_operand.hbm [shape: f32[8,128], index: 5, kind: output, shape index: {}]
  %s6 = sld [smem:[#allocation0]]
  $region42: #{tpu_custom_call.1} parent=0
    _
  %s8 = ssub.s32 1, %s6
  %s9 = scalar_select 0, %s8, %s6
  $region1: #{tpu_custom_call.1} parent=0
    #allocation2 [shape = 'u8[4096]{0}', space=vmem, size = 0x1000, scoped, tag = 'input window, operand 0, single buffered']
    #allocation3 [shape = 's32[1]{0}', space=sflag, size = 0x4, scoped, tag = 'scoped memory for tpu_custom_call.1']
    #allocation4 [shape = 's32[1]{0}', space=sflag, size = 0x4, scoped, tag = 'scoped memory for tpu_custom_call.1']
    #allocation5 [shape = 'u8[32768]{0}', space=vmem, size = 0x8000, scoped, tag = 'input window, operand 1, single buffered']
    #allocation6 [shape = 's32[1]{0}', space=sflag, size = 0x4, scoped, tag = 'scoped memory for tpu_custom_call.1']
    #allocation7 [shape = 'u8[32768]{0}', space=vmem, size = 0x8000, scoped, tag = 'input window, operand 3, single buffered']
    #allocation8 [shape = 'u8[4096]{0}', space=vmem, size = 0x1000, scoped, tag = 'output window, operand 0, single buffered']
    %10 = vsyncpa [#allocation3], 0
    %11 = vsyncpa [#allocation6], 0
    %12 = vsyncpa [#allocation4], 0
    // Predicated region
    $region2: #{tpu_custom_call.1} parent=1 // pred_check
      _
    $region3: #{tpu_custom_call.1} parent=1 // pred_check_branch
      %14 = sbr.rel (0) target = $region5
    $region4: #{tpu_custom_call.1} parent=1 // pred_region
      %s16 = ssub.s32 128, 128
      %17 = vsyncadd [#allocation3], %s16
      %s19 = sshll.u32 [#allocation2], 4
      %s20 = int_to_ptr.vmem [resolvable:$true] %s19
      %22 = dma.hbm_to_vmem [thread:$0]  %s0, 128, %s20, [#allocation3]
    $region5: #{tpu_custom_call.1} parent=1 // pred_fallthru
      _
    // Predicated region
    $region6: #{tpu_custom_call.1} parent=1 // pred_check
      _
    $region7: #{tpu_custom_call.1} parent=1 // pred_check_branch
      %24 = sbr.rel (0) target = $region9
    $region8: #{tpu_custom_call.1} parent=1 // pred_region
      %s26 = ssub.s32 1024, 1024
      %27 = vsyncadd [#allocation6], %s26
      %s28 = sshll.u32 [#allocation5], 4
      %s29 = int_to_ptr.vmem [resolvable:$true] %s28
      %34 = dma.hbm_to_vmem [thread:$0]  %s1, 1024, %s29, [#allocation6], 64, 64, 4
    $region9: #{tpu_custom_call.1} parent=1 // pred_fallthru
      _
    // Predicated region
    $region10: #{tpu_custom_call.1} parent=1 // pred_check
      _
    $region11: #{tpu_custom_call.1} parent=1 // pred_check_branch
      %36 = sbr.rel (0) target = $region13
    $region12: #{tpu_custom_call.1} parent=1 // pred_region
      _
    $region13: #{tpu_custom_call.1} parent=1 // pred_fallthru
      _
    // Predicated region
    $region14: #{tpu_custom_call.1} parent=1 // pred_check
      _
    $region15: #{tpu_custom_call.1} parent=1 // pred_check_branch
      %38 = sbr.rel (0) target = $region17
    $region16: #{tpu_custom_call.1} parent=1 // pred_region
      %s40 = ssub.s32 1024, 1024
      %41 = vsyncadd [#allocation6], %s40
      %s42 = sshll.u32 [#allocation7], 4
      %s43 = int_to_ptr.vmem [resolvable:$true] %s42
      %48 = dma.hbm_to_vmem [thread:$0]  %s3, 1024, %s43, [#allocation6], 64, 64, 4
    $region17: #{tpu_custom_call.1} parent=1 // pred_fallthru
      _
    // Predicated region
    $region18: #{tpu_custom_call.1} parent=1 // pred_check
      _
    $region19: #{tpu_custom_call.1} parent=1 // pred_check_branch
      %50 = sbr.rel (0) target = $region21
    $region20: #{tpu_custom_call.1} parent=1 // pred_region
      _
    $region21: #{tpu_custom_call.1} parent=1 // pred_fallthru
      _
    // Predicated region
    $region22: #{tpu_custom_call.1} parent=1 // pred_check
      _
    $region23: #{tpu_custom_call.1} parent=1 // pred_check_branch
      %52 = sbr.rel (0) target = $region25
    $region24: #{tpu_custom_call.1} parent=1 // pred_region
      %53 = dma.done [#allocation3], 128
    $region25: #{tpu_custom_call.1} parent=1 // pred_fallthru
      _
    // Predicated region
    $region26: #{tpu_custom_call.1} parent=1 // pred_check
      _
    $region27: #{tpu_custom_call.1} parent=1 // pred_check_branch
      %55 = sbr.rel (0) target = $region29
    $region28: #{tpu_custom_call.1} parent=1 // pred_region
      %56 = dma.done [#allocation6], 1024
    $region29: #{tpu_custom_call.1} parent=1 // pred_fallthru
      _
    // Predicated region
    $region30: #{tpu_custom_call.1} parent=1 // pred_check
      _
    $region31: #{tpu_custom_call.1} parent=1 // pred_check_branch
      %58 = sbr.rel (0) target = $region33
    $region32: #{tpu_custom_call.1} parent=1 // pred_region
      %59 = dma.done [#allocation6], 1024
    $region33: #{tpu_custom_call.1} parent=1 // pred_fallthru
      _
    %v61 = vld [vmem:[#allocation2] sm:$0xff]
    %v62 = vpack.c.bf16 %v61, %v61
    %v63 = vld [vmem:[#allocation5] sm:$0xf]
    %v64 = vld [vmem:[#allocation5 + $0x4] sm:$0xf]
    %v65 = vld [vmem:[#allocation5 + $0x8] sm:$0xf]
    %v66 = vld [vmem:[#allocation5 + $0xc] sm:$0xf]
    %v67 = vld [vmem:[#allocation5 + $0x10] sm:$0xf]
    %v68 = vld [vmem:[#allocation5 + $0x14] sm:$0xf]
    %v69 = vld [vmem:[#allocation5 + $0x18] sm:$0xf]
    %v70 = vld [vmem:[#allocation5 + $0x1c] sm:$0xf]
    %v71 = vld [vmem:[#allocation5 + $0x20] sm:$0xf]
    %v72 = vld [vmem:[#allocation5 + $0x24] sm:$0xf]
    %v73 = vld [vmem:[#allocation5 + $0x28] sm:$0xf]
    %v74 = vld [vmem:[#allocation5 + $0x2c] sm:$0xf]
    %v75 = vld [vmem:[#allocation5 + $0x30] sm:$0xf]
    %v76 = vld [vmem:[#allocation5 + $0x34] sm:$0xf]
    %v77 = vld [vmem:[#allocation5 + $0x38] sm:$0xf]
    %v78 = vld [vmem:[#allocation5 + $0x3c] sm:$0xf]
    %v79 = vld [vmem:[%s2] sm:$0x1]
    %v81 = vlaneseq
    %v82 = vshrl.u32 %v81, 7
    %v83 = vsub.s32 0, %v82
    %v84 = vrot.slane %v79, %v83
    %v102 = vunpack.c.l.b16 %v63
    %v103 = vunpack.c.l.b16 %v64
    %v104 = vunpack.c.l.b16 %v65
    %v105 = vunpack.c.l.b16 %v66
    %v106 = vunpack.c.l.b16 %v67
    %v107 = vunpack.c.l.b16 %v68
    %v108 = vunpack.c.l.b16 %v69
    %v109 = vunpack.c.l.b16 %v70
    %v110 = vunpack.c.l.b16 %v71
    %v111 = vunpack.c.l.b16 %v72
    %v112 = vunpack.c.l.b16 %v73
    %v113 = vunpack.c.l.b16 %v74
    %v114 = vunpack.c.l.b16 %v75
    %v115 = vunpack.c.l.b16 %v76
    %v116 = vunpack.c.l.b16 %v77
    %v117 = vunpack.c.l.b16 %v78
    %v118 = vpack.c.b16 %v103, %v102
    %v119 = vpack.c.b16 %v105, %v104
    %v120 = vpack.c.b16 %v107, %v106
    %v121 = vpack.c.b16 %v109, %v108
    %v122 = vpack.c.b16 %v111, %v110
    %v123 = vpack.c.b16 %v113, %v112
    %v124 = vpack.c.b16 %v115, %v114
    %v125 = vpack.c.b16 %v117, %v116
    %134 = vmatprep.subr.bf16.mxu0 0
    %135 = vmatpush1.bf16.msra.mxu0 %v125
    %136 = vmatprep.subr.bf16.mxu0 0
    %137 = vmatpush1.bf16.msra.mxu0 %v124
    %138 = vmatprep.subr.bf16.mxu0 0
    %139 = vmatpush1.bf16.msra.mxu0 %v123
    %140 = vmatprep.subr.bf16.mxu0 0
    %141 = vmatpush1.bf16.msra.mxu0 %v122
    %142 = vmatprep.subr.bf16.mxu0 0
    %143 = vmatpush1.bf16.msra.mxu0 %v121
    %144 = vmatprep.subr.bf16.mxu0 0
    %145 = vmatpush1.bf16.msra.mxu0 %v120
    %146 = vmatprep.subr.bf16.mxu0 0
    %147 = vmatpush1.bf16.msra.mxu0 %v119
    %148 = vmatprep.subr.bf16.mxu0 0
    %149 = vmatpush1.bf16.msra.mxu0 %v118
    %150 = vmatprep.subr.bf16.mxu0 0
    %151 = vmatpush2.bf16.msra.mxu0 0
    %152 = vmatprep.subr.bf16.mxu0 0
    %153 = vmatpush2.bf16.msra.mxu0 0
    %154 = vmatprep.subr.bf16.mxu0 0
    %155 = vmatpush2.bf16.msra.mxu0 0
    %156 = vmatprep.subr.bf16.mxu0 0
    %157 = vmatpush2.bf16.msra.mxu0 0
    %158 = vmatprep.subr.bf16.mxu0 0
    %159 = vmatpush2.bf16.msra.mxu0 0
    %160 = vmatprep.subr.bf16.mxu0 0
    %161 = vmatpush2.bf16.msra.mxu0 0
    %162 = vmatprep.subr.bf16.mxu0 0
    %163 = vmatpush2.bf16.msra.mxu0 0
    %164 = vmatprep.subr.bf16.mxu0 0
    %165 = vmatpush2.bf16.msra.mxu0 0
    %166 = vmatprep.mubr.bf16.mxu0 0
    %167 = vmatmul.mubr.bf16.gmra.mxu0 %v62
    %v168 = vpop.f32.mrf.mxu0
    %v169 = vadd.f32 %v84, %v168
    %v170 = vpop.f32.mrf.mxu0
    %v171 = vpop.f32.mrf.mxu0
    %v172 = vpop.f32.mrf.mxu0
    %173 = vdwg.mxu0
    %v174 = vmax.f32 %v169, 0.0
    %v175 = vpack.c.bf16 %v174, %v174
    %v176 = vld [vmem:[#allocation7] sm:$0xf]
    %v177 = vld [vmem:[#allocation7 + $0x4] sm:$0xf]
    %v178 = vld [vmem:[#allocation7 + $0x8] sm:$0xf]
    %v179 = vld [vmem:[#allocation7 + $0xc] sm:$0xf]
    %v180 = vld [vmem:[#allocation7 + $0x10] sm:$0xf]
    %v181 = vld [vmem:[#allocation7 + $0x14] sm:$0xf]
    %v182 = vld [vmem:[#allocation7 + $0x18] sm:$0xf]
    %v183 = vld [vmem:[#allocation7 + $0x1c] sm:$0xf]
    %v184 = vld [vmem:[#allocation7 + $0x20] sm:$0xf]
    %v185 = vld [vmem:[#allocation7 + $0x24] sm:$0xf]
    %v186 = vld [vmem:[#allocation7 + $0x28] sm:$0xf]
    %v187 = vld [vmem:[#allocation7 + $0x2c] sm:$0xf]
    %v188 = vld [vmem:[#allocation7 + $0x30] sm:$0xf]
    %v189 = vld [vmem:[#allocation7 + $0x34] sm:$0xf]
    %v190 = vld [vmem:[#allocation7 + $0x38] sm:$0xf]
    %v191 = vld [vmem:[#allocation7 + $0x3c] sm:$0xf]
    %v192 = vld [vmem:[%s4] sm:$0x1]
    %v194 = vlaneseq
    %v195 = vshrl.u32 %v194, 7
    %v196 = vsub.s32 0, %v195
    %v197 = vrot.slane %v192, %v196
    %v215 = vunpack.c.l.b16 %v176
    %v216 = vunpack.c.l.b16 %v177
    %v217 = vunpack.c.l.b16 %v178
    %v218 = vunpack.c.l.b16 %v179
    %v219 = vunpack.c.l.b16 %v180
    %v220 = vunpack.c.l.b16 %v181
    %v221 = vunpack.c.l.b16 %v182
    %v222 = vunpack.c.l.b16 %v183
    %v223 = vunpack.c.l.b16 %v184
    %v224 = vunpack.c.l.b16 %v185
    %v225 = vunpack.c.l.b16 %v186
    %v226 = vunpack.c.l.b16 %v187
    %v227 = vunpack.c.l.b16 %v188
    %v228 = vunpack.c.l.b16 %v189
    %v229 = vunpack.c.l.b16 %v190
    %v230 = vunpack.c.l.b16 %v191
    %v231 = vpack.c.b16 %v216, %v215
    %v232 = vpack.c.b16 %v218, %v217
    %v233 = vpack.c.b16 %v220, %v219
    %v234 = vpack.c.b16 %v222, %v221
    %v235 = vpack.c.b16 %v224, %v223
    %v236 = vpack.c.b16 %v226, %v225
    %v237 = vpack.c.b16 %v228, %v227
    %v238 = vpack.c.b16 %v230, %v229
    %247 = vmatprep.subr.bf16.mxu0 0
    %248 = vmatpush1.bf16.msra.mxu0 %v238
    %249 = vmatprep.subr.bf16.mxu0 0
    %250 = vmatpush1.bf16.msra.mxu0 %v237
    %251 = vmatprep.subr.bf16.mxu0 0
    %252 = vmatpush1.bf16.msra.mxu0 %v236
    %253 = vmatprep.subr.bf16.mxu0 0
    %254 = vmatpush1.bf16.msra.mxu0 %v235
    %255 = vmatprep.subr.bf16.mxu0 0
    %256 = vmatpush1.bf16.msra.mxu0 %v234
    %257 = vmatprep.subr.bf16.mxu0 0
    %258 = vmatpush1.bf16.msra.mxu0 %v233
    %259 = vmatprep.subr.bf16.mxu0 0
    %260 = vmatpush1.bf16.msra.mxu0 %v232
    %261 = vmatprep.subr.bf16.mxu0 0
    %262 = vmatpush1.bf16.msra.mxu0 %v231
    %263 = vmatprep.subr.bf16.mxu0 0
    %264 = vmatpush2.bf16.msra.mxu0 0
    %265 = vmatprep.subr.bf16.mxu0 0
    %266 = vmatpush2.bf16.msra.mxu0 0
    %267 = vmatprep.subr.bf16.mxu0 0
    %268 = vmatpush2.bf16.msra.mxu0 0
    %269 = vmatprep.subr.bf16.mxu0 0
    %270 = vmatpush2.bf16.msra.mxu0 0
    %271 = vmatprep.subr.bf16.mxu0 0
    %272 = vmatpush2.bf16.msra.mxu0 0
    %273 = vmatprep.subr.bf16.mxu0 0
    %274 = vmatpush2.bf16.msra.mxu0 0
    %275 = vmatprep.subr.bf16.mxu0 0
    %276 = vmatpush2.bf16.msra.mxu0 0
    %277 = vmatprep.subr.bf16.mxu0 0
    %278 = vmatpush2.bf16.msra.mxu0 0
    %279 = vmatprep.mubr.bf16.mxu0 0
    %280 = vmatmul.mubr.bf16.gmra.mxu0 %v175
    %v281 = vpop.f32.mrf.mxu0
    %v282 = vadd.f32 %v197, %v281
    %v283 = vpop.f32.mrf.mxu0
    %v284 = vpop.f32.mrf.mxu0
    %v285 = vpop.f32.mrf.mxu0
    %286 = vdwg.mxu0
    %v287 = vmax.f32 %v282, 0.0
    %v288 = vadd.f32 %v287, %v61
    %289 = vst [vmem:[#allocation8] sm:$0xff] %v288
    // Predicated region
    $region34: #{tpu_custom_call.1} parent=1 // pred_check
      _
    $region35: #{tpu_custom_call.1} parent=1 // pred_check_branch
      %291 = sbr.rel (0) target = $region37
    $region36: #{tpu_custom_call.1} parent=1 // pred_region
      %s293 = ssub.s32 128, 128
      %294 = vsyncadd [#allocation4], %s293
      %s296 = sshll.u32 [#allocation8], 4
      %s297 = int_to_ptr.vmem [resolvable:$true] %s296
      %299 = dma.vmem_to_hbm [thread:$0]  %s297, 128, %s5, [#allocation4]
    $region37: #{tpu_custom_call.1} parent=1 // pred_fallthru
      _
    // Predicated region
    $region38: #{tpu_custom_call.1} parent=1 // pred_check
      _
    $region39: #{tpu_custom_call.1} parent=1 // pred_check_branch
      %301 = sbr.rel (0) target = $region41
    $region40: #{tpu_custom_call.1} parent=1 // pred_region
      %302 = dma.done [#allocation4], 128
    $region41: #{tpu_custom_call.1} parent=1 // pred_fallthru
      _
    %303 = vsyncpa [#allocation3], 1
    %304 = vsyncpa [#allocation6], 1
    %305 = vsyncpa [#allocation4], 1

</llo_original>
